<compile_context>
chip_gen: v6e
topology: v6e:2x2x1
jax: 0.10.0
libtpu: 0.0.40
codegen_flags: <defaults>
</compile_context>

<pallas_src>
import functools

import jax
import jax.numpy as jnp
import numpy as np
from jax.experimental import pallas as pl
from jax.experimental.pallas import tpu as pltpu

# Sublane multiple per element size (f32 -> 8, bf16 -> 16, int8 -> 32).
_SUBLANE_MULT = {4: 8, 2: 16, 1: 32}
# Narrow (W < 128) lane-dense path unrolls 3 stores per image row; cap it.
_MAX_NARROW_ROWS = 64


# ---------------------------------------------------------------------------
# Kernels (static slice loads/stores only -> robust lowering everywhere)
# ---------------------------------------------------------------------------
def _pad_kernel_wide(x_ref, o_ref, *, pad):
    """3-D layout.  x_ref: (c_blk, H, W)  o_ref: (c_blk, Ho, Wo)."""
    c_blk, H, W = x_ref.shape
    Wo = o_ref.shape[-1]
    x = x_ref[...]

    # Only the 2*pad boundary rows are zero-filled (no full-tile zero init).
    zrows = jnp.zeros((c_blk, pad, Wo), o_ref.dtype)
    o_ref[:, 0:pad, :] = zrows                       # top zero band
    o_ref[:, pad + H:, :] = zrows                    # bottom zero band
    o_ref[:, pad:pad + H, pad:pad + W] = x           # dense center
    o_ref[:, pad:pad + H, 0:pad] = x[:, :, W - pad:] # left circular wrap
    o_ref[:, pad:pad + H, pad + W:] = x[:, :, :pad]  # right circular wrap


def _pad_kernel_narrow(x_ref, o_ref, *, pad, H, W):
    """Lane-dense flat layout for W < 128.

    x_ref: (c_blk, H*W)  o_ref: (c_blk, Ho*Wo), both lane-dense so the HBM
    DMAs move full rows of H*W / Ho*Wo contiguous elements per channel.
    """
    Wo = W + 2 * pad
    c_blk = x_ref.shape[0]

    zband = jnp.zeros((c_blk, pad * Wo), o_ref.dtype)
    o_ref[:, 0:pad * Wo] = zband                     # top zero band
    o_ref[:, (pad + H) * Wo:] = zband                # bottom zero band

    # Per-row assembly with static slices (all offsets are Python ints).
    for h in range(H):
        row = x_ref[:, h * W:(h + 1) * W]            # (c_blk, W)
        base = (pad + h) * Wo
        o_ref[:, base:base + pad] = row[:, W - pad:]         # left wrap
        o_ref[:, base + pad:base + pad + W] = row            # center
        o_ref[:, base + pad + W:base + Wo] = row[:, :pad]    # right wrap


# ---------------------------------------------------------------------------
# VMEM budgeting helpers (lane/sublane-padded accounting)
# ---------------------------------------------------------------------------
def _round_up(a, b):
    return -(-a // b) * b


def _sub_mult(dtype):
    return _SUBLANE_MULT.get(jnp.dtype(dtype).itemsize, 8)


def _vmem_capacity_bytes():
    try:
        info = pltpu.get_tpu_info()
        cap = getattr(info, "vmem_capacity_bytes", None)
        if cap:
            return int(cap)
    except Exception:
        pass
    return 64 << 20  # conservative default (v7x per-TC physical VMEM)


def _vmem_limit_bytes(cap, need):
    # Generous but bounded: at least the computed need (+margin), and at
    # least min(32 MiB, cap/2); never above physical capacity.
    return int(min(cap, max(need + (2 << 20), min(32 << 20, cap // 2))))


def _tile_bytes_3d(c_blk, rows, cols, dtype):
    sub = _sub_mult(dtype)
    return (c_blk * _round_up(rows, sub) * _round_up(cols, 128)
            * jnp.dtype(dtype).itemsize)


def _tile_bytes_2d(rows, cols, dtype):
    sub = _sub_mult(dtype)
    return (_round_up(rows, sub) * _round_up(cols, 128)
            * jnp.dtype(dtype).itemsize)


def _need_wide(c_blk, H, W, Ho, Wo, dtype):
    t_in = _tile_bytes_3d(c_blk, H, W, dtype)
    t_out = _tile_bytes_3d(c_blk, Ho, Wo, dtype)
    # 2x: Pallas double-buffers input and output tiles; + one input-tile of
    # live value / spill headroom for the loaded x.
    return 2 * (t_in + t_out) + t_in


def _need_narrow(c_blk, HW, HoWo, dtype):
    t_in = _tile_bytes_2d(c_blk, HW, dtype)
    t_out = _tile_bytes_2d(c_blk, HoWo, dtype)
    return 2 * (t_in + t_out) + t_in


def _divisors_desc(n):
    ds = set()
    i = 1
    while i * i <= n:
        if n % i == 0:
            ds.add(i)
            ds.add(n // i)
        i += 1
    return sorted(ds, reverse=True)


def _pick_block(nc, need_fn, align_ok, budget):
    """Largest divisor of nc that fits the budget, preferring >=2 (even)
    grid steps so the v7x megacore can shard the parallel axis."""
    feas = [d for d in _divisors_desc(nc) if align_ok(d) and need_fn(d) <= budget]
    if not feas:
        return None
    for pred in ((lambda d: (nc // d) >= 2 and (nc // d) % 2 == 0),
                 (lambda d: (nc // d) >= 2)):
        for d in feas:  # descending -> largest block first
            if pred(d):
                return d
    return feas[0]


# ---------------------------------------------------------------------------
# Wrapper
# ---------------------------------------------------------------------------
def periodic_pad_2d(x, pad_width: int):
    """Pallas TPU implementation of PeriodicPad2d.forward for NCHW input."""
    if x.ndim != 4:
        raise ValueError(f"expected NCHW input, got shape {x.shape}")
    N, C, H, W = x.shape
    if pad_width < 0:
        raise ValueError("pad_width must be >= 0")
    if pad_width == 0:
        return x
    if pad_width > W:
        raise ValueError(
            f"circular pad_width ({pad_width}) must be <= width ({W})")

    pad = int(pad_width)
    Ho, Wo = H + 2 * pad, W + 2 * pad
    NC = N * C
    dtype = x.dtype
    itemsize = jnp.dtype(dtype).itemsize

    cap = _vmem_capacity_bytes()
    budget = min(cap // 4, 24 << 20)

    cost = pl.CostEstimate(flops=0, transcendentals=0,
                           bytes_accessed=NC * (H * W + Ho * Wo) * itemsize)
    sub = _sub_mult(dtype)

    # --- lane-dense flat path for narrow images ---------------------------
    use_narrow = (W < 128) and (H <= _MAX_NARROW_ROWS)
    c_blk_narrow = None
    if use_narrow:
        # Flat 2-D blocks: second-to-last block dim is c_blk, so it must be a
        # sublane multiple or cover the whole (flattened) batch axis.
        align_ok = lambda d: (d % sub == 0) or (d == NC)
        c_blk_narrow = _pick_block(
            NC, lambda d: _need_narrow(d, H * W, Ho * Wo, dtype),
            align_ok, budget)
        use_narrow = c_blk_narrow is not None

    if use_narrow:
        c_blk = c_blk_narrow
        need = _need_narrow(c_blk, H * W, Ho * Wo, dtype)
        kernel = functools.partial(_pad_kernel_narrow, pad=pad, H=H, W=W)
        out_flat = pl.pallas_call(
            kernel,
            out_shape=jax.ShapeDtypeStruct((NC, Ho * Wo), dtype),
            grid_spec=pltpu.PrefetchScalarGridSpec(
                num_scalar_prefetch=0,
                grid=(NC // c_blk,),
                in_specs=[pl.BlockSpec((c_blk, H * W), lambda i: (i, 0))],
                out_specs=pl.BlockSpec((c_blk, Ho * Wo), lambda i: (i, 0)),
            ),
            compiler_params=pltpu.CompilerParams(
                dimension_semantics=("parallel",),
                vmem_limit_bytes=_vmem_limit_bytes(cap, need)),
            cost_estimate=cost,
        )(x.reshape(NC, H * W))
        return out_flat.reshape(N, C, Ho, Wo)

    # --- wide path (W >= 128, or narrow shapes the flat path can't tile) ---
    c_blk = _pick_block(NC, lambda d: _need_wide(d, H, W, Ho, Wo, dtype),
                        lambda d: True, budget)
    if c_blk is None:
        c_blk = 1  # single channel per step; vmem_limit covers the real need
    need = _need_wide(c_blk, H, W, Ho, Wo, dtype)
    kernel = functools.partial(_pad_kernel_wide, pad=pad)
    out = pl.pallas_call(
        kernel,
        out_shape=jax.ShapeDtypeStruct((NC, Ho, Wo), dtype),
        grid_spec=pltpu.PrefetchScalarGridSpec(
            num_scalar_prefetch=0,
            grid=(NC // c_blk,),
            in_specs=[pl.BlockSpec((c_blk, H, W), lambda i: (i, 0, 0))],
            out_specs=pl.BlockSpec((c_blk, Ho, Wo), lambda i: (i, 0, 0)),
        ),
        compiler_params=pltpu.CompilerParams(
            dimension_semantics=("parallel",),
            vmem_limit_bytes=_vmem_limit_bytes(cap, need)),
        cost_estimate=cost,
    )(x.reshape(NC, H, W))
    return out.reshape(N, C, Ho, Wo)


# ---------------------------------------------------------------------------
# Reference + test
# ---------------------------------------------------------------------------
def _reference_pad(x, pad_width):
    """Pure-numpy reference mirroring the PyTorch semantics."""
    x = np.asarray(x)
    out = np.concatenate(
        [x[..., :, -pad_width:], x, x[..., :, :pad_width]], axis=-1)
    zeros = np.zeros(out.shape[:-2] + (pad_width, out.shape[-1]),
                     dtype=out.dtype)
    return np.concatenate([zeros, out, zeros], axis=-2)


if __name__ == "__main__":
    key = jax.random.PRNGKey(0)
    k1, k2 = jax.random.split(key)

    # 1) Narrow-W case (lane-dense flat path): module-typical toy shape.
    N, C, H, W = 2, 4, 16, 16
    pad_width = 1
    x1 = jax.random.normal(k1, (N, C, H, W), dtype=jnp.float32)
    out1 = jax.block_until_ready(periodic_pad_2d(x1, pad_width))
    ref1 = _reference_pad(np.asarray(x1), pad_width)
    assert out1.shape == ref1.shape, (out1.shape, ref1.shape)
    np.testing.assert_allclose(np.asarray(out1), ref1, rtol=0, atol=0)

    # 2) Wide-W case (3-D path, multi-step parallel grid).
    x2 = jax.random.normal(k2, (1, 2, 8, 128), dtype=jnp.float32)
    out2 = jax.block_until_ready(periodic_pad_2d(x2, 2))
    ref2 = _reference_pad(np.asarray(x2), 2)
    assert out2.shape == ref2.shape, (out2.shape, ref2.shape)
    np.testing.assert_allclose(np.asarray(out2), ref2, rtol=0, atol=0)

    print("KERNEL_OK")
</pallas_src>

<mosaic_0001>
module attributes {stable_mosaic.version = 11 : i64} {
  func.func @_pad_kernel_narrow(%arg0: i32, %arg1: memref<8x256xf32, #tpu.memory_space<vmem>>, %arg2: memref<8x324xf32, #tpu.memory_space<vmem>>) attributes {dimension_semantics = [#tpu.dimension_semantics<parallel>], iteration_bounds = array<i64: 1>, scalar_prefetch = 0 : i64, scratch_operands = 0 : i64, tpu.core_type = #tpu.core_type<tc>, window_params = [{transform_indices = @transform_0, window_bounds = array<i64: 8, 256>}, {transform_indices = @transform_1, window_bounds = array<i64: 8, 324>}]} {
    %cst = arith.constant 0.000000e+00 : f32
    %0 = vector.broadcast %cst : f32 to vector<8x18xf32>
    %c0 = arith.constant 0 : index
    %c0_0 = arith.constant 0 : index
    %1 = vector.load %arg2[%c0, %c0_0] : memref<8x324xf32, #tpu.memory_space<vmem>>, vector<8x18xf32>
    tpu.vector_store %arg2[%c0, %c0_0], %0 {strides = array<i32>} : memref<8x324xf32, #tpu.memory_space<vmem>>, vector<8x18xf32>,
    %c0_1 = arith.constant 0 : index
    %c306 = arith.constant 306 : index
    %2 = vector.load %arg2[%c0_1, %c306] : memref<8x324xf32, #tpu.memory_space<vmem>>, vector<8x18xf32>
    tpu.vector_store %arg2[%c0_1, %c306], %0 {strides = array<i32>} : memref<8x324xf32, #tpu.memory_space<vmem>>, vector<8x18xf32>,
    %c0_2 = arith.constant 0 : index
    %c0_3 = arith.constant 0 : index
    %3 = vector.load %arg1[%c0_2, %c0_3] : memref<8x256xf32, #tpu.memory_space<vmem>>, vector<8x16xf32>
    %4 = vector.extract_strided_slice %3 {offsets = [0, 15], sizes = [8, 1], strides = [1, 1]} : vector<8x16xf32> to vector<8x1xf32>
    %c0_4 = arith.constant 0 : index
    %c18 = arith.constant 18 : index
    %5 = vector.load %arg2[%c0_4, %c18] : memref<8x324xf32, #tpu.memory_space<vmem>>, vector<8x1xf32>
    tpu.vector_store %arg2[%c0_4, %c18], %4 {strides = array<i32>} : memref<8x324xf32, #tpu.memory_space<vmem>>, vector<8x1xf32>,
    %c0_5 = arith.constant 0 : index
    %c19 = arith.constant 19 : index
    %6 = vector.load %arg2[%c0_5, %c19] : memref<8x324xf32, #tpu.memory_space<vmem>>, vector<8x16xf32>
    tpu.vector_store %arg2[%c0_5, %c19], %3 {strides = array<i32>} : memref<8x324xf32, #tpu.memory_space<vmem>>, vector<8x16xf32>,
    %7 = vector.extract_strided_slice %3 {offsets = [0, 0], sizes = [8, 1], strides = [1, 1]} : vector<8x16xf32> to vector<8x1xf32>
    %c0_6 = arith.constant 0 : index
    %c35 = arith.constant 35 : index
    %8 = vector.load %arg2[%c0_6, %c35] : memref<8x324xf32, #tpu.memory_space<vmem>>, vector<8x1xf32>
    tpu.vector_store %arg2[%c0_6, %c35], %7 {strides = array<i32>} : memref<8x324xf32, #tpu.memory_space<vmem>>, vector<8x1xf32>,
    %c0_7 = arith.constant 0 : index
    %c16 = arith.constant 16 : index
    %9 = vector.load %arg1[%c0_7, %c16] : memref<8x256xf32, #tpu.memory_space<vmem>>, vector<8x16xf32>
    %10 = vector.extract_strided_slice %9 {offsets = [0, 15], sizes = [8, 1], strides = [1, 1]} : vector<8x16xf32> to vector<8x1xf32>
    %c0_8 = arith.constant 0 : index
    %c36 = arith.constant 36 : index
    %11 = vector.load %arg2[%c0_8, %c36] : memref<8x324xf32, #tpu.memory_space<vmem>>, vector<8x1xf32>
    tpu.vector_store %arg2[%c0_8, %c36], %10 {strides = array<i32>} : memref<8x324xf32, #tpu.memory_space<vmem>>, vector<8x1xf32>,
    %c0_9 = arith.constant 0 : index
    %c37 = arith.constant 37 : index
    %12 = vector.load %arg2[%c0_9, %c37] : memref<8x324xf32, #tpu.memory_space<vmem>>, vector<8x16xf32>
    tpu.vector_store %arg2[%c0_9, %c37], %9 {strides = array<i32>} : memref<8x324xf32, #tpu.memory_space<vmem>>, vector<8x16xf32>,
    %13 = vector.extract_strided_slice %9 {offsets = [0, 0], sizes = [8, 1], strides = [1, 1]} : vector<8x16xf32> to vector<8x1xf32>
    %c0_10 = arith.constant 0 : index
    %c53 = arith.constant 53 : index
    %14 = vector.load %arg2[%c0_10, %c53] : memref<8x324xf32, #tpu.memory_space<vmem>>, vector<8x1xf32>
    tpu.vector_store %arg2[%c0_10, %c53], %13 {strides = array<i32>} : memref<8x324xf32, #tpu.memory_space<vmem>>, vector<8x1xf32>,
    %c0_11 = arith.constant 0 : index
    %c32 = arith.constant 32 : index
    %15 = vector.load %arg1[%c0_11, %c32] : memref<8x256xf32, #tpu.memory_space<vmem>>, vector<8x16xf32>
    %16 = vector.extract_strided_slice %15 {offsets = [0, 15], sizes = [8, 1], strides = [1, 1]} : vector<8x16xf32> to vector<8x1xf32>
    %c0_12 = arith.constant 0 : index
    %c54 = arith.constant 54 : index
    %17 = vector.load %arg2[%c0_12, %c54] : memref<8x324xf32, #tpu.memory_space<vmem>>, vector<8x1xf32>
    tpu.vector_store %arg2[%c0_12, %c54], %16 {strides = array<i32>} : memref<8x324xf32, #tpu.memory_space<vmem>>, vector<8x1xf32>,
    %c0_13 = arith.constant 0 : index
    %c55 = arith.constant 55 : index
    %18 = vector.load %arg2[%c0_13, %c55] : memref<8x324xf32, #tpu.memory_space<vmem>>, vector<8x16xf32>
    tpu.vector_store %arg2[%c0_13, %c55], %15 {strides = array<i32>} : memref<8x324xf32, #tpu.memory_space<vmem>>, vector<8x16xf32>,
    %19 = vector.extract_strided_slice %15 {offsets = [0, 0], sizes = [8, 1], strides = [1, 1]} : vector<8x16xf32> to vector<8x1xf32>
    %c0_14 = arith.constant 0 : index
    %c71 = arith.constant 71 : index
    %20 = vector.load %arg2[%c0_14, %c71] : memref<8x324xf32, #tpu.memory_space<vmem>>, vector<8x1xf32>
    tpu.vector_store %arg2[%c0_14, %c71], %19 {strides = array<i32>} : memref<8x324xf32, #tpu.memory_space<vmem>>, vector<8x1xf32>,
    %c0_15 = arith.constant 0 : index
    %c48 = arith.constant 48 : index
    %21 = vector.load %arg1[%c0_15, %c48] : memref<8x256xf32, #tpu.memory_space<vmem>>, vector<8x16xf32>
    %22 = vector.extract_strided_slice %21 {offsets = [0, 15], sizes = [8, 1], strides = [1, 1]} : vector<8x16xf32> to vector<8x1xf32>
    %c0_16 = arith.constant 0 : index
    %c72 = arith.constant 72 : index
    %23 = vector.load %arg2[%c0_16, %c72] : memref<8x324xf32, #tpu.memory_space<vmem>>, vector<8x1xf32>
    tpu.vector_store %arg2[%c0_16, %c72], %22 {strides = array<i32>} : memref<8x324xf32, #tpu.memory_space<vmem>>, vector<8x1xf32>,
    %c0_17 = arith.constant 0 : index
    %c73 = arith.constant 73 : index
    %24 = vector.load %arg2[%c0_17, %c73] : memref<8x324xf32, #tpu.memory_space<vmem>>, vector<8x16xf32>
    tpu.vector_store %arg2[%c0_17, %c73], %21 {strides = array<i32>} : memref<8x324xf32, #tpu.memory_space<vmem>>, vector<8x16xf32>,
    %25 = vector.extract_strided_slice %21 {offsets = [0, 0], sizes = [8, 1], strides = [1, 1]} : vector<8x16xf32> to vector<8x1xf32>
    %c0_18 = arith.constant 0 : index
    %c89 = arith.constant 89 : index
    %26 = vector.load %arg2[%c0_18, %c89] : memref<8x324xf32, #tpu.memory_space<vmem>>, vector<8x1xf32>
    tpu.vector_store %arg2[%c0_18, %c89], %25 {strides = array<i32>} : memref<8x324xf32, #tpu.memory_space<vmem>>, vector<8x1xf32>,
    %c0_19 = arith.constant 0 : index
    %c64 = arith.constant 64 : index
    %27 = vector.load %arg1[%c0_19, %c64] : memref<8x256xf32, #tpu.memory_space<vmem>>, vector<8x16xf32>
    %28 = vector.extract_strided_slice %27 {offsets = [0, 15], sizes = [8, 1], strides = [1, 1]} : vector<8x16xf32> to vector<8x1xf32>
    %c0_20 = arith.constant 0 : index
    %c90 = arith.constant 90 : index
    %29 = vector.load %arg2[%c0_20, %c90] : memref<8x324xf32, #tpu.memory_space<vmem>>, vector<8x1xf32>
    tpu.vector_store %arg2[%c0_20, %c90], %28 {strides = array<i32>} : memref<8x324xf32, #tpu.memory_space<vmem>>, vector<8x1xf32>,
    %c0_21 = arith.constant 0 : index
    %c91 = arith.constant 91 : index
    %30 = vector.load %arg2[%c0_21, %c91] : memref<8x324xf32, #tpu.memory_space<vmem>>, vector<8x16xf32>
    tpu.vector_store %arg2[%c0_21, %c91], %27 {strides = array<i32>} : memref<8x324xf32, #tpu.memory_space<vmem>>, vector<8x16xf32>,
    %31 = vector.extract_strided_slice %27 {offsets = [0, 0], sizes = [8, 1], strides = [1, 1]} : vector<8x16xf32> to vector<8x1xf32>
    %c0_22 = arith.constant 0 : index
    %c107 = arith.constant 107 : index
    %32 = vector.load %arg2[%c0_22, %c107] : memref<8x324xf32, #tpu.memory_space<vmem>>, vector<8x1xf32>
    tpu.vector_store %arg2[%c0_22, %c107], %31 {strides = array<i32>} : memref<8x324xf32, #tpu.memory_space<vmem>>, vector<8x1xf32>,
    %c0_23 = arith.constant 0 : index
    %c80 = arith.constant 80 : index
    %33 = vector.load %arg1[%c0_23, %c80] : memref<8x256xf32, #tpu.memory_space<vmem>>, vector<8x16xf32>
    %34 = vector.extract_strided_slice %33 {offsets = [0, 15], sizes = [8, 1], strides = [1, 1]} : vector<8x16xf32> to vector<8x1xf32>
    %c0_24 = arith.constant 0 : index
    %c108 = arith.constant 108 : index
    %35 = vector.load %arg2[%c0_24, %c108] : memref<8x324xf32, #tpu.memory_space<vmem>>, vector<8x1xf32>
    tpu.vector_store %arg2[%c0_24, %c108], %34 {strides = array<i32>} : memref<8x324xf32, #tpu.memory_space<vmem>>, vector<8x1xf32>,
    %c0_25 = arith.constant 0 : index
    %c109 = arith.constant 109 : index
    %36 = vector.load %arg2[%c0_25, %c109] : memref<8x324xf32, #tpu.memory_space<vmem>>, vector<8x16xf32>
    tpu.vector_store %arg2[%c0_25, %c109], %33 {strides = array<i32>} : memref<8x324xf32, #tpu.memory_space<vmem>>, vector<8x16xf32>,
    %37 = vector.extract_strided_slice %33 {offsets = [0, 0], sizes = [8, 1], strides = [1, 1]} : vector<8x16xf32> to vector<8x1xf32>
    %c0_26 = arith.constant 0 : index
    %c125 = arith.constant 125 : index
    %38 = vector.load %arg2[%c0_26, %c125] : memref<8x324xf32, #tpu.memory_space<vmem>>, vector<8x1xf32>
    tpu.vector_store %arg2[%c0_26, %c125], %37 {strides = array<i32>} : memref<8x324xf32, #tpu.memory_space<vmem>>, vector<8x1xf32>,
    %c0_27 = arith.constant 0 : index
    %c96 = arith.constant 96 : index
    %39 = vector.load %arg1[%c0_27, %c96] : memref<8x256xf32, #tpu.memory_space<vmem>>, vector<8x16xf32>
    %40 = vector.extract_strided_slice %39 {offsets = [0, 15], sizes = [8, 1], strides = [1, 1]} : vector<8x16xf32> to vector<8x1xf32>
    %c0_28 = arith.constant 0 : index
    %c126 = arith.constant 126 : index
    %41 = vector.load %arg2[%c0_28, %c126] : memref<8x324xf32, #tpu.memory_space<vmem>>, vector<8x1xf32>
    tpu.vector_store %arg2[%c0_28, %c126], %40 {strides = array<i32>} : memref<8x324xf32, #tpu.memory_space<vmem>>, vector<8x1xf32>,
    %c0_29 = arith.constant 0 : index
    %c127 = arith.constant 127 : index
    %42 = vector.load %arg2[%c0_29, %c127] : memref<8x324xf32, #tpu.memory_space<vmem>>, vector<8x16xf32>
    tpu.vector_store %arg2[%c0_29, %c127], %39 {strides = array<i32>} : memref<8x324xf32, #tpu.memory_space<vmem>>, vector<8x16xf32>,
    %43 = vector.extract_strided_slice %39 {offsets = [0, 0], sizes = [8, 1], strides = [1, 1]} : vector<8x16xf32> to vector<8x1xf32>
    %c0_30 = arith.constant 0 : index
    %c143 = arith.constant 143 : index
    %44 = vector.load %arg2[%c0_30, %c143] : memref<8x324xf32, #tpu.memory_space<vmem>>, vector<8x1xf32>
    tpu.vector_store %arg2[%c0_30, %c143], %43 {strides = array<i32>} : memref<8x324xf32, #tpu.memory_space<vmem>>, vector<8x1xf32>,
    %c0_31 = arith.constant 0 : index
    %c112 = arith.constant 112 : index
    %45 = vector.load %arg1[%c0_31, %c112] : memref<8x256xf32, #tpu.memory_space<vmem>>, vector<8x16xf32>
    %46 = vector.extract_strided_slice %45 {offsets = [0, 15], sizes = [8, 1], strides = [1, 1]} : vector<8x16xf32> to vector<8x1xf32>
    %c0_32 = arith.constant 0 : index
    %c144 = arith.constant 144 : index
    %47 = vector.load %arg2[%c0_32, %c144] : memref<8x324xf32, #tpu.memory_space<vmem>>, vector<8x1xf32>
    tpu.vector_store %arg2[%c0_32, %c144], %46 {strides = array<i32>} : memref<8x324xf32, #tpu.memory_space<vmem>>, vector<8x1xf32>,
    %c0_33 = arith.constant 0 : index
    %c145 = arith.constant 145 : index
    %48 = vector.load %arg2[%c0_33, %c145] : memref<8x324xf32, #tpu.memory_space<vmem>>, vector<8x16xf32>
    tpu.vector_store %arg2[%c0_33, %c145], %45 {strides = array<i32>} : memref<8x324xf32, #tpu.memory_space<vmem>>, vector<8x16xf32>,
    %49 = vector.extract_strided_slice %45 {offsets = [0, 0], sizes = [8, 1], strides = [1, 1]} : vector<8x16xf32> to vector<8x1xf32>
    %c0_34 = arith.constant 0 : index
    %c161 = arith.constant 161 : index
    %50 = vector.load %arg2[%c0_34, %c161] : memref<8x324xf32, #tpu.memory_space<vmem>>, vector<8x1xf32>
    tpu.vector_store %arg2[%c0_34, %c161], %49 {strides = array<i32>} : memref<8x324xf32, #tpu.memory_space<vmem>>, vector<8x1xf32>,
    %c0_35 = arith.constant 0 : index
    %c128 = arith.constant 128 : index
    %51 = vector.load %arg1[%c0_35, %c128] : memref<8x256xf32, #tpu.memory_space<vmem>>, vector<8x16xf32>
    %52 = vector.extract_strided_slice %51 {offsets = [0, 15], sizes = [8, 1], strides = [1, 1]} : vector<8x16xf32> to vector<8x1xf32>
    %c0_36 = arith.constant 0 : index
    %c162 = arith.constant 162 : index
    %53 = vector.load %arg2[%c0_36, %c162] : memref<8x324xf32, #tpu.memory_space<vmem>>, vector<8x1xf32>
    tpu.vector_store %arg2[%c0_36, %c162], %52 {strides = array<i32>} : memref<8x324xf32, #tpu.memory_space<vmem>>, vector<8x1xf32>,
    %c0_37 = arith.constant 0 : index
    %c163 = arith.constant 163 : index
    %54 = vector.load %arg2[%c0_37, %c163] : memref<8x324xf32, #tpu.memory_space<vmem>>, vector<8x16xf32>
    tpu.vector_store %arg2[%c0_37, %c163], %51 {strides = array<i32>} : memref<8x324xf32, #tpu.memory_space<vmem>>, vector<8x16xf32>,
    %55 = vector.extract_strided_slice %51 {offsets = [0, 0], sizes = [8, 1], strides = [1, 1]} : vector<8x16xf32> to vector<8x1xf32>
    %c0_38 = arith.constant 0 : index
    %c179 = arith.constant 179 : index
    %56 = vector.load %arg2[%c0_38, %c179] : memref<8x324xf32, #tpu.memory_space<vmem>>, vector<8x1xf32>
    tpu.vector_store %arg2[%c0_38, %c179], %55 {strides = array<i32>} : memref<8x324xf32, #tpu.memory_space<vmem>>, vector<8x1xf32>,
    %c0_39 = arith.constant 0 : index
    %c144_40 = arith.constant 144 : index
    %57 = vector.load %arg1[%c0_39, %c144_40] : memref<8x256xf32, #tpu.memory_space<vmem>>, vector<8x16xf32>
    %58 = vector.extract_strided_slice %57 {offsets = [0, 15], sizes = [8, 1], strides = [1, 1]} : vector<8x16xf32> to vector<8x1xf32>
    %c0_41 = arith.constant 0 : index
    %c180 = arith.constant 180 : index
    %59 = vector.load %arg2[%c0_41, %c180] : memref<8x324xf32, #tpu.memory_space<vmem>>, vector<8x1xf32>
    tpu.vector_store %arg2[%c0_41, %c180], %58 {strides = array<i32>} : memref<8x324xf32, #tpu.memory_space<vmem>>, vector<8x1xf32>,
    %c0_42 = arith.constant 0 : index
    %c181 = arith.constant 181 : index
    %60 = vector.load %arg2[%c0_42, %c181] : memref<8x324xf32, #tpu.memory_space<vmem>>, vector<8x16xf32>
    tpu.vector_store %arg2[%c0_42, %c181], %57 {strides = array<i32>} : memref<8x324xf32, #tpu.memory_space<vmem>>, vector<8x16xf32>,
    %61 = vector.extract_strided_slice %57 {offsets = [0, 0], sizes = [8, 1], strides = [1, 1]} : vector<8x16xf32> to vector<8x1xf32>
    %c0_43 = arith.constant 0 : index
    %c197 = arith.constant 197 : index
    %62 = vector.load %arg2[%c0_43, %c197] : memref<8x324xf32, #tpu.memory_space<vmem>>, vector<8x1xf32>
    tpu.vector_store %arg2[%c0_43, %c197], %61 {strides = array<i32>} : memref<8x324xf32, #tpu.memory_space<vmem>>, vector<8x1xf32>,
    %c0_44 = arith.constant 0 : index
    %c160 = arith.constant 160 : index
    %63 = vector.load %arg1[%c0_44, %c160] : memref<8x256xf32, #tpu.memory_space<vmem>>, vector<8x16xf32>
    %64 = vector.extract_strided_slice %63 {offsets = [0, 15], sizes = [8, 1], strides = [1, 1]} : vector<8x16xf32> to vector<8x1xf32>
    %c0_45 = arith.constant 0 : index
    %c198 = arith.constant 198 : index
    %65 = vector.load %arg2[%c0_45, %c198] : memref<8x324xf32, #tpu.memory_space<vmem>>, vector<8x1xf32>
    tpu.vector_store %arg2[%c0_45, %c198], %64 {strides = array<i32>} : memref<8x324xf32, #tpu.memory_space<vmem>>, vector<8x1xf32>,
    %c0_46 = arith.constant 0 : index
    %c199 = arith.constant 199 : index
    %66 = vector.load %arg2[%c0_46, %c199] : memref<8x324xf32, #tpu.memory_space<vmem>>, vector<8x16xf32>
    tpu.vector_store %arg2[%c0_46, %c199], %63 {strides = array<i32>} : memref<8x324xf32, #tpu.memory_space<vmem>>, vector<8x16xf32>,
    %67 = vector.extract_strided_slice %63 {offsets = [0, 0], sizes = [8, 1], strides = [1, 1]} : vector<8x16xf32> to vector<8x1xf32>
    %c0_47 = arith.constant 0 : index
    %c215 = arith.constant 215 : index
    %68 = vector.load %arg2[%c0_47, %c215] : memref<8x324xf32, #tpu.memory_space<vmem>>, vector<8x1xf32>
    tpu.vector_store %arg2[%c0_47, %c215], %67 {strides = array<i32>} : memref<8x324xf32, #tpu.memory_space<vmem>>, vector<8x1xf32>,
    %c0_48 = arith.constant 0 : index
    %c176 = arith.constant 176 : index
    %69 = vector.load %arg1[%c0_48, %c176] : memref<8x256xf32, #tpu.memory_space<vmem>>, vector<8x16xf32>
    %70 = vector.extract_strided_slice %69 {offsets = [0, 15], sizes = [8, 1], strides = [1, 1]} : vector<8x16xf32> to vector<8x1xf32>
    %c0_49 = arith.constant 0 : index
    %c216 = arith.constant 216 : index
    %71 = vector.load %arg2[%c0_49, %c216] : memref<8x324xf32, #tpu.memory_space<vmem>>, vector<8x1xf32>
    tpu.vector_store %arg2[%c0_49, %c216], %70 {strides = array<i32>} : memref<8x324xf32, #tpu.memory_space<vmem>>, vector<8x1xf32>,
    %c0_50 = arith.constant 0 : index
    %c217 = arith.constant 217 : index
    %72 = vector.load %arg2[%c0_50, %c217] : memref<8x324xf32, #tpu.memory_space<vmem>>, vector<8x16xf32>
    tpu.vector_store %arg2[%c0_50, %c217], %69 {strides = array<i32>} : memref<8x324xf32, #tpu.memory_space<vmem>>, vector<8x16xf32>,
    %73 = vector.extract_strided_slice %69 {offsets = [0, 0], sizes = [8, 1], strides = [1, 1]} : vector<8x16xf32> to vector<8x1xf32>
    %c0_51 = arith.constant 0 : index
    %c233 = arith.constant 233 : index
    %74 = vector.load %arg2[%c0_51, %c233] : memref<8x324xf32, #tpu.memory_space<vmem>>, vector<8x1xf32>
    tpu.vector_store %arg2[%c0_51, %c233], %73 {strides = array<i32>} : memref<8x324xf32, #tpu.memory_space<vmem>>, vector<8x1xf32>,
    %c0_52 = arith.constant 0 : index
    %c192 = arith.constant 192 : index
    %75 = vector.load %arg1[%c0_52, %c192] : memref<8x256xf32, #tpu.memory_space<vmem>>, vector<8x16xf32>
    %76 = vector.extract_strided_slice %75 {offsets = [0, 15], sizes = [8, 1], strides = [1, 1]} : vector<8x16xf32> to vector<8x1xf32>
    %c0_53 = arith.constant 0 : index
    %c234 = arith.constant 234 : index
    %77 = vector.load %arg2[%c0_53, %c234] : memref<8x324xf32, #tpu.memory_space<vmem>>, vector<8x1xf32>
    tpu.vector_store %arg2[%c0_53, %c234], %76 {strides = array<i32>} : memref<8x324xf32, #tpu.memory_space<vmem>>, vector<8x1xf32>,
    %c0_54 = arith.constant 0 : index
    %c235 = arith.constant 235 : index
    %78 = vector.load %arg2[%c0_54, %c235] : memref<8x324xf32, #tpu.memory_space<vmem>>, vector<8x16xf32>
    tpu.vector_store %arg2[%c0_54, %c235], %75 {strides = array<i32>} : memref<8x324xf32, #tpu.memory_space<vmem>>, vector<8x16xf32>,
    %79 = vector.extract_strided_slice %75 {offsets = [0, 0], sizes = [8, 1], strides = [1, 1]} : vector<8x16xf32> to vector<8x1xf32>
    %c0_55 = arith.constant 0 : index
    %c251 = arith.constant 251 : index
    %80 = vector.load %arg2[%c0_55, %c251] : memref<8x324xf32, #tpu.memory_space<vmem>>, vector<8x1xf32>
    tpu.vector_store %arg2[%c0_55, %c251], %79 {strides = array<i32>} : memref<8x324xf32, #tpu.memory_space<vmem>>, vector<8x1xf32>,
    %c0_56 = arith.constant 0 : index
    %c208 = arith.constant 208 : index
    %81 = vector.load %arg1[%c0_56, %c208] : memref<8x256xf32, #tpu.memory_space<vmem>>, vector<8x16xf32>
    %82 = vector.extract_strided_slice %81 {offsets = [0, 15], sizes = [8, 1], strides = [1, 1]} : vector<8x16xf32> to vector<8x1xf32>
    %c0_57 = arith.constant 0 : index
    %c252 = arith.constant 252 : index
    %83 = vector.load %arg2[%c0_57, %c252] : memref<8x324xf32, #tpu.memory_space<vmem>>, vector<8x1xf32>
    tpu.vector_store %arg2[%c0_57, %c252], %82 {strides = array<i32>} : memref<8x324xf32, #tpu.memory_space<vmem>>, vector<8x1xf32>,
    %c0_58 = arith.constant 0 : index
    %c253 = arith.constant 253 : index
    %84 = vector.load %arg2[%c0_58, %c253] : memref<8x324xf32, #tpu.memory_space<vmem>>, vector<8x16xf32>
    tpu.vector_store %arg2[%c0_58, %c253], %81 {strides = array<i32>} : memref<8x324xf32, #tpu.memory_space<vmem>>, vector<8x16xf32>,
    %85 = vector.extract_strided_slice %81 {offsets = [0, 0], sizes = [8, 1], strides = [1, 1]} : vector<8x16xf32> to vector<8x1xf32>
    %c0_59 = arith.constant 0 : index
    %c269 = arith.constant 269 : index
    %86 = vector.load %arg2[%c0_59, %c269] : memref<8x324xf32, #tpu.memory_space<vmem>>, vector<8x1xf32>
    tpu.vector_store %arg2[%c0_59, %c269], %85 {strides = array<i32>} : memref<8x324xf32, #tpu.memory_space<vmem>>, vector<8x1xf32>,
    %c0_60 = arith.constant 0 : index
    %c224 = arith.constant 224 : index
    %87 = vector.load %arg1[%c0_60, %c224] : memref<8x256xf32, #tpu.memory_space<vmem>>, vector<8x16xf32>
    %88 = vector.extract_strided_slice %87 {offsets = [0, 15], sizes = [8, 1], strides = [1, 1]} : vector<8x16xf32> to vector<8x1xf32>
    %c0_61 = arith.constant 0 : index
    %c270 = arith.constant 270 : index
    %89 = vector.load %arg2[%c0_61, %c270] : memref<8x324xf32, #tpu.memory_space<vmem>>, vector<8x1xf32>
    tpu.vector_store %arg2[%c0_61, %c270], %88 {strides = array<i32>} : memref<8x324xf32, #tpu.memory_space<vmem>>, vector<8x1xf32>,
    %c0_62 = arith.constant 0 : index
    %c271 = arith.constant 271 : index
    %90 = vector.load %arg2[%c0_62, %c271] : memref<8x324xf32, #tpu.memory_space<vmem>>, vector<8x16xf32>
    tpu.vector_store %arg2[%c0_62, %c271], %87 {strides = array<i32>} : memref<8x324xf32, #tpu.memory_space<vmem>>, vector<8x16xf32>,
    %91 = vector.extract_strided_slice %87 {offsets = [0, 0], sizes = [8, 1], strides = [1, 1]} : vector<8x16xf32> to vector<8x1xf32>
    %c0_63 = arith.constant 0 : index
    %c287 = arith.constant 287 : index
    %92 = vector.load %arg2[%c0_63, %c287] : memref<8x324xf32, #tpu.memory_space<vmem>>, vector<8x1xf32>
    tpu.vector_store %arg2[%c0_63, %c287], %91 {strides = array<i32>} : memref<8x324xf32, #tpu.memory_space<vmem>>, vector<8x1xf32>,
    %c0_64 = arith.constant 0 : index
    %c240 = arith.constant 240 : index
    %93 = vector.load %arg1[%c0_64, %c240] : memref<8x256xf32, #tpu.memory_space<vmem>>, vector<8x16xf32>
    %94 = vector.extract_strided_slice %93 {offsets = [0, 15], sizes = [8, 1], strides = [1, 1]} : vector<8x16xf32> to vector<8x1xf32>
    %c0_65 = arith.constant 0 : index
    %c288 = arith.constant 288 : index
    %95 = vector.load %arg2[%c0_65, %c288] : memref<8x324xf32, #tpu.memory_space<vmem>>, vector<8x1xf32>
    tpu.vector_store %arg2[%c0_65, %c288], %94 {strides = array<i32>} : memref<8x324xf32, #tpu.memory_space<vmem>>, vector<8x1xf32>,
    %c0_66 = arith.constant 0 : index
    %c289 = arith.constant 289 : index
    %96 = vector.load %arg2[%c0_66, %c289] : memref<8x324xf32, #tpu.memory_space<vmem>>, vector<8x16xf32>
    tpu.vector_store %arg2[%c0_66, %c289], %93 {strides = array<i32>} : memref<8x324xf32, #tpu.memory_space<vmem>>, vector<8x16xf32>,
    %97 = vector.extract_strided_slice %93 {offsets = [0, 0], sizes = [8, 1], strides = [1, 1]} : vector<8x16xf32> to vector<8x1xf32>
    %c0_67 = arith.constant 0 : index
    %c305 = arith.constant 305 : index
    %98 = vector.load %arg2[%c0_67, %c305] : memref<8x324xf32, #tpu.memory_space<vmem>>, vector<8x1xf32>
    tpu.vector_store %arg2[%c0_67, %c305], %97 {strides = array<i32>} : memref<8x324xf32, #tpu.memory_space<vmem>>, vector<8x1xf32>,
    return
  }
  func.func @transform_0(%arg0: i32) -> (i32, i32) {
    %c0_i32 = arith.constant 0 : i32
    %c0_i32_0 = arith.constant 0 : i32
    return %arg0, %c0_i32 : i32, i32
  }
  func.func @transform_1(%arg0: i32) -> (i32, i32) {
    %c0_i32 = arith.constant 0 : i32
    %c0_i32_0 = arith.constant 0 : i32
    return %arg0, %c0_i32 : i32, i32
  }
}

</mosaic_0001>

<llo_original>
// kernel: tpu_custom_call.1
$region0: #{tpu_custom_call.1}
  #allocation0 [shape = 'u32[]', space=smem, size = 0x4, offset = 0x4, fixed_abs, tag = 'smem constant byte address 0x4 - core index']
  #allocation1 [shape = 'u32[144,128]{1,0:T(1,128)}', space=vmem, size = 0x12000, scoped, tag = 'internal scratch']
  %s0 = inlined_call_operand.hbm [shape: f32[8,256], index: 0, kind: input, shape index: {}]
  %s1 = inlined_call_operand.hbm [shape: f32[8,324], index: 1, kind: output, shape index: {}]
  %s2 = sld [smem:[#allocation0]]
  $region18: #{tpu_custom_call.1} parent=0
    _
  %s4 = ssub.s32 1, %s2
  %s5 = scalar_select 0, %s4, %s2
  $region1: #{tpu_custom_call.1} parent=0
    #allocation2 [shape = 'u8[8192]{0}', space=vmem, size = 0x2000, scoped, tag = 'input window, operand 0, single buffered']
    #allocation3 [shape = 's32[1]{0}', space=sflag, size = 0x4, scoped, tag = 'scoped memory for tpu_custom_call.1']
    #allocation4 [shape = 's32[1]{0}', space=sflag, size = 0x4, scoped, tag = 'scoped memory for tpu_custom_call.1']
    #allocation5 [shape = 'u8[12288]{0}', space=vmem, size = 0x3000, scoped, tag = 'output window, operand 0, single buffered']
    %6 = vsyncpa [#allocation3], 0
    %7 = vsyncpa [#allocation4], 0
    // Predicated region
    $region2: #{tpu_custom_call.1} parent=1 // pred_check
      _
    $region3: #{tpu_custom_call.1} parent=1 // pred_check_branch
      %9 = sbr.rel (0) target = $region5
    $region4: #{tpu_custom_call.1} parent=1 // pred_region
      %s11 = ssub.s32 256, 256
      %12 = vsyncadd [#allocation3], %s11
      %s14 = sshll.u32 [#allocation2], 4
      %s15 = int_to_ptr.vmem [resolvable:$true] %s14
      %17 = dma.hbm_to_vmem [thread:$0]  %s0, 256, %s15, [#allocation3]
    $region5: #{tpu_custom_call.1} parent=1 // pred_fallthru
      _
    // Predicated region
    $region6: #{tpu_custom_call.1} parent=1 // pred_check
      _
    $region7: #{tpu_custom_call.1} parent=1 // pred_check_branch
      %19 = sbr.rel (0) target = $region9
    $region8: #{tpu_custom_call.1} parent=1 // pred_region
      %20 = dma.done [#allocation3], 256
    $region9: #{tpu_custom_call.1} parent=1 // pred_fallthru
      _
    %vm21 = vcmask 146432
    %22 = vst.msk [vmem:[#allocation5] sm:$0xff] %vm21, 0.0
    %vm23 = vcmask 556432
    %24 = vst.msk [vmem:[#allocation5 + $0x10] sm:$0xff] %vm23, 0.0
    %v25 = vld [vmem:[#allocation2] sm:$0xff]
    %27 = vrot.lane.b32.xlu0 %v25, 3
    %v28 = vpop.permute.xlu0 %27
    %vm30 = vcmask 154768
    %31 = vst.msk [vmem:[#allocation5] sm:$0xff] %vm30, %v28
    %32 = vrot.lane.b32.xlu0 %v25, 19
    %v33 = vpop.permute.xlu0 %32
    %vm35 = vcmask 285848
    %36 = vst.msk [vmem:[#allocation5] sm:$0xff] %vm35, %v33
    %37 = vrot.lane.b32.xlu0 %v25, 35
    %v38 = vpop.permute.xlu0 %37
    %vm40 = vcmask 294168
    %41 = vst.msk [vmem:[#allocation5] sm:$0xff] %vm40, %v38
    %v42 = vld [vmem:[#allocation2] sm:$0xff]
    %44 = vrot.lane.b32.xlu0 %v42, 5
    %v45 = vpop.permute.xlu0 %44
    %vm47 = vcmask 302368
    %48 = vst.msk [vmem:[#allocation5] sm:$0xff] %vm47, %v45
    %49 = vrot.lane.b32.xlu0 %v42, 21
    %v50 = vpop.permute.xlu0 %49
    %vm52 = vcmask 433448
    %53 = vst.msk [vmem:[#allocation5] sm:$0xff] %vm52, %v50
    %54 = vrot.lane.b32.xlu0 %v42, 37
    %v55 = vpop.permute.xlu0 %54
    %vm57 = vcmask 441768
    %58 = vst.msk [vmem:[#allocation5] sm:$0xff] %vm57, %v55
    %v59 = vld [vmem:[#allocation2] sm:$0xff]
    %61 = vrot.lane.b32.xlu0 %v59, 7
    %v62 = vpop.permute.xlu0 %61
    %vm64 = vcmask 449968
    %65 = vst.msk [vmem:[#allocation5] sm:$0xff] %vm64, %v62
    %66 = vrot.lane.b32.xlu0 %v59, 23
    %v67 = vpop.permute.xlu0 %66
    %vm69 = vcmask 581048
    %70 = vst.msk [vmem:[#allocation5] sm:$0xff] %vm69, %v67
    %71 = vrot.lane.b32.xlu0 %v59, 39
    %v72 = vpop.permute.xlu0 %71
    %vm74 = vcmask 589368
    %75 = vst.msk [vmem:[#allocation5] sm:$0xff] %vm74, %v72
    %v76 = vld [vmem:[#allocation2] sm:$0xff]
    %78 = vrot.lane.b32.xlu0 %v76, 9
    %v79 = vpop.permute.xlu0 %78
    %vm81 = vcmask 597568
    %82 = vst.msk [vmem:[#allocation5] sm:$0xff] %vm81, %v79
    %83 = vrot.lane.b32.xlu0 %v76, 25
    %v84 = vpop.permute.xlu0 %83
    %vm86 = vcmask 728648
    %87 = vst.msk [vmem:[#allocation5] sm:$0xff] %vm86, %v84
    %88 = vrot.lane.b32.xlu0 %v76, 41
    %v89 = vpop.permute.xlu0 %88
    %vm91 = vcmask 736968
    %92 = vst.msk [vmem:[#allocation5] sm:$0xff] %vm91, %v89
    %v93 = vld [vmem:[#allocation2] sm:$0xff]
    %95 = vrot.lane.b32.xlu0 %v93, 11
    %v96 = vpop.permute.xlu0 %95
    %vm98 = vcmask 745168
    %99 = vst.msk [vmem:[#allocation5] sm:$0xff] %vm98, %v96
    %100 = vrot.lane.b32.xlu0 %v93, 27
    %v101 = vpop.permute.xlu0 %100
    %vm103 = vcmask 876248
    %104 = vst.msk [vmem:[#allocation5] sm:$0xff] %vm103, %v101
    %105 = vrot.lane.b32.xlu0 %v93, 43
    %v106 = vpop.permute.xlu0 %105
    %vm108 = vcmask 884568
    %109 = vst.msk [vmem:[#allocation5] sm:$0xff] %vm108, %v106
    %v110 = vld [vmem:[#allocation2] sm:$0xff]
    %112 = vrot.lane.b32.xlu0 %v110, 13
    %v113 = vpop.permute.xlu0 %112
    %vm115 = vcmask 892768
    %116 = vst.msk [vmem:[#allocation5] sm:$0xff] %vm115, %v113
    %117 = vrot.lane.b32.xlu0 %v110, 29
    %v118 = vpop.permute.xlu0 %117
    %vm120 = vcmask 1023848
    %121 = vst.msk [vmem:[#allocation5] sm:$0xff] %vm120, %v118
    %122 = vrot.lane.b32.xlu0 %v110, 45
    %v123 = vpop.permute.xlu0 %122
    %vm125 = vcmask 1032168
    %126 = vst.msk [vmem:[#allocation5] sm:$0xff] %vm125, %v123
    %v127 = vld [vmem:[#allocation2] sm:$0xff]
    %129 = vrot.lane.b32.xlu0 %v127, 15
    %v130 = vpop.permute.xlu0 %129
    %vm132 = vcmask 1040368
    %133 = vst.msk [vmem:[#allocation5] sm:$0xff] %vm132, %v130
    %134 = vrot.lane.b32.xlu0 %v127, 31
    %v135 = vpop.permute.xlu0 %134
    %vm137 = vcmask 1048568
    %138 = vst.msk [vmem:[#allocation5] sm:$0xff] %vm137, %v135
    %vm139 = vcmask 121856
    %140 = vst.msk [vmem:[#allocation5 + $0x8] sm:$0xff] %vm139, %v135
    %141 = vrot.lane.b32.xlu0 %v127, 47
    %v142 = vpop.permute.xlu0 %141
    %vm144 = vcmask 130168
    %145 = vst.msk [vmem:[#allocation5 + $0x8] sm:$0xff] %vm144, %v142
    %v146 = vld [vmem:[#allocation2] sm:$0xff]
    %148 = vrot.lane.b32.xlu0 %v146, 17
    %v149 = vpop.permute.xlu0 %148
    %vm151 = vcmask 138368
    %152 = vst.msk [vmem:[#allocation5 + $0x8] sm:$0xff] %vm151, %v149
    %153 = vrot.lane.b32.xlu0 %v146, 33
    %v154 = vpop.permute.xlu0 %153
    %vm156 = vcmask 269448
    %157 = vst.msk [vmem:[#allocation5 + $0x8] sm:$0xff] %vm156, %v154
    %158 = vrot.lane.b32.xlu0 %v146, 49
    %v159 = vpop.permute.xlu0 %158
    %vm161 = vcmask 277768
    %162 = vst.msk [vmem:[#allocation5 + $0x8] sm:$0xff] %vm161, %v159
    %v163 = vld [vmem:[#allocation2 + $0x8] sm:$0xff]
    %165 = vrot.lane.b32.xlu0 %v163, 19
    %v166 = vpop.permute.xlu0 %165
    %vm168 = vcmask 285968
    %169 = vst.msk [vmem:[#allocation5 + $0x8] sm:$0xff] %vm168, %v166
    %170 = vrot.lane.b32.xlu0 %v163, 35
    %v171 = vpop.permute.xlu0 %170
    %vm173 = vcmask 417048
    %174 = vst.msk [vmem:[#allocation5 + $0x8] sm:$0xff] %vm173, %v171
    %175 = vrot.lane.b32.xlu0 %v163, 51
    %v176 = vpop.permute.xlu0 %175
    %vm178 = vcmask 425368
    %179 = vst.msk [vmem:[#allocation5 + $0x8] sm:$0xff] %vm178, %v176
    %v180 = vld [vmem:[#allocation2 + $0x8] sm:$0xff]
    %182 = vrot.lane.b32.xlu0 %v180, 21
    %v183 = vpop.permute.xlu0 %182
    %vm185 = vcmask 433568
    %186 = vst.msk [vmem:[#allocation5 + $0x8] sm:$0xff] %vm185, %v183
    %187 = vrot.lane.b32.xlu0 %v180, 37
    %v188 = vpop.permute.xlu0 %187
    %vm190 = vcmask 564648
    %191 = vst.msk [vmem:[#allocation5 + $0x8] sm:$0xff] %vm190, %v188
    %192 = vrot.lane.b32.xlu0 %v180, 53
    %v193 = vpop.permute.xlu0 %192
    %vm195 = vcmask 572968
    %196 = vst.msk [vmem:[#allocation5 + $0x8] sm:$0xff] %vm195, %v193
    %v197 = vld [vmem:[#allocation2 + $0x8] sm:$0xff]
    %199 = vrot.lane.b32.xlu0 %v197, 23
    %v200 = vpop.permute.xlu0 %199
    %vm202 = vcmask 581168
    %203 = vst.msk [vmem:[#allocation5 + $0x8] sm:$0xff] %vm202, %v200
    %204 = vrot.lane.b32.xlu0 %v197, 39
    %v205 = vpop.permute.xlu0 %204
    %vm207 = vcmask 712248
    %208 = vst.msk [vmem:[#allocation5 + $0x8] sm:$0xff] %vm207, %v205
    %209 = vrot.lane.b32.xlu0 %v197, 55
    %v210 = vpop.permute.xlu0 %209
    %vm212 = vcmask 720568
    %213 = vst.msk [vmem:[#allocation5 + $0x8] sm:$0xff] %vm212, %v210
    %v214 = vld [vmem:[#allocation2 + $0x8] sm:$0xff]
    %216 = vrot.lane.b32.xlu0 %v214, 25
    %v217 = vpop.permute.xlu0 %216
    %vm219 = vcmask 728768
    %220 = vst.msk [vmem:[#allocation5 + $0x8] sm:$0xff] %vm219, %v217
    %221 = vrot.lane.b32.xlu0 %v214, 41
    %v222 = vpop.permute.xlu0 %221
    %vm224 = vcmask 859848
    %225 = vst.msk [vmem:[#allocation5 + $0x8] sm:$0xff] %vm224, %v222
    %226 = vrot.lane.b32.xlu0 %v214, 57
    %v227 = vpop.permute.xlu0 %226
    %vm229 = vcmask 868168
    %230 = vst.msk [vmem:[#allocation5 + $0x8] sm:$0xff] %vm229, %v227
    %v231 = vld [vmem:[#allocation2 + $0x8] sm:$0xff]
    %233 = vrot.lane.b32.xlu0 %v231, 27
    %v234 = vpop.permute.xlu0 %233
    %vm236 = vcmask 876368
    %237 = vst.msk [vmem:[#allocation5 + $0x8] sm:$0xff] %vm236, %v234
    %238 = vrot.lane.b32.xlu0 %v231, 43
    %v239 = vpop.permute.xlu0 %238
    %vm241 = vcmask 1007448
    %242 = vst.msk [vmem:[#allocation5 + $0x8] sm:$0xff] %vm241, %v239
    %243 = vrot.lane.b32.xlu0 %v231, 59
    %v244 = vpop.permute.xlu0 %243
    %vm246 = vcmask 1015768
    %247 = vst.msk [vmem:[#allocation5 + $0x8] sm:$0xff] %vm246, %v244
    %v248 = vld [vmem:[#allocation2 + $0x8] sm:$0xff]
    %250 = vrot.lane.b32.xlu0 %v248, 29
    %v251 = vpop.permute.xlu0 %250
    %vm253 = vcmask 1023968
    %254 = vst.msk [vmem:[#allocation5 + $0x8] sm:$0xff] %vm253, %v251
    %255 = vrot.lane.b32.xlu0 %v248, 45
    %v256 = vpop.permute.xlu0 %255
    %vm258 = vcmask 1048552
    %259 = vst.msk [vmem:[#allocation5 + $0x8] sm:$0xff] %vm258, %v256
    %vm260 = vcmask 105472
    %261 = vst.msk [vmem:[#allocation5 + $0x10] sm:$0xff] %vm260, %v256
    %262 = vrot.lane.b32.xlu0 %v248, 61
    %v263 = vpop.permute.xlu0 %262
    %vm265 = vcmask 113768
    %266 = vst.msk [vmem:[#allocation5 + $0x10] sm:$0xff] %vm265, %v263
    %v267 = vld [vmem:[#allocation2 + $0x8] sm:$0xff]
    %269 = vrot.lane.b32.xlu0 %v267, 31
    %v270 = vpop.permute.xlu0 %269
    %vm272 = vcmask 121968
    %273 = vst.msk [vmem:[#allocation5 + $0x10] sm:$0xff] %vm272, %v270
    %274 = vrot.lane.b32.xlu0 %v267, 47
    %v275 = vpop.permute.xlu0 %274
    %vm277 = vcmask 253048
    %278 = vst.msk [vmem:[#allocation5 + $0x10] sm:$0xff] %vm277, %v275
    %279 = vrot.lane.b32.xlu0 %v267, 63
    %v280 = vpop.permute.xlu0 %279
    %vm282 = vcmask 261368
    %283 = vst.msk [vmem:[#allocation5 + $0x10] sm:$0xff] %vm282, %v280
    %v284 = vld [vmem:[#allocation2 + $0x8] sm:$0xff]
    %286 = vrot.lane.b32.xlu0 %v284, 33
    %v287 = vpop.permute.xlu0 %286
    %vm289 = vcmask 269568
    %290 = vst.msk [vmem:[#allocation5 + $0x10] sm:$0xff] %vm289, %v287
    %291 = vrot.lane.b32.xlu0 %v284, 49
    %v292 = vpop.permute.xlu0 %291
    %vm294 = vcmask 400648
    %295 = vst.msk [vmem:[#allocation5 + $0x10] sm:$0xff] %vm294, %v292
    %296 = vrot.lane.b32.xlu0 %v284, 65
    %v297 = vpop.permute.xlu0 %296
    %vm299 = vcmask 408968
    %300 = vst.msk [vmem:[#allocation5 + $0x10] sm:$0xff] %vm299, %v297
    // Predicated region
    $region10: #{tpu_custom_call.1} parent=1 // pred_check
      _
    $region11: #{tpu_custom_call.1} parent=1 // pred_check_branch
      %302 = sbr.rel (0) target = $region13
    $region12: #{tpu_custom_call.1} parent=1 // pred_region
      %s304 = ssub.s32 384, 384
      %305 = vsyncadd [#allocation4], %s304
      %s307 = sshll.u32 [#allocation5], 4
      %s308 = int_to_ptr.vmem [resolvable:$true] %s307
      %310 = dma.vmem_to_hbm [thread:$0]  %s308, 384, %s1, [#allocation4]
    $region13: #{tpu_custom_call.1} parent=1 // pred_fallthru
      _
    // Predicated region
    $region14: #{tpu_custom_call.1} parent=1 // pred_check
      _
    $region15: #{tpu_custom_call.1} parent=1 // pred_check_branch
      %312 = sbr.rel (0) target = $region17
    $region16: #{tpu_custom_call.1} parent=1 // pred_region
      %313 = dma.done [#allocation4], 384
    $region17: #{tpu_custom_call.1} parent=1 // pred_fallthru
      _
    %314 = vsyncpa [#allocation3], 1
    %315 = vsyncpa [#allocation4], 1

</llo_original>
